<compile_context>
chip_gen: v7x
topology: tpu7x:2x2x1
jax: 0.10.0
libtpu: 0.0.40
codegen_flags: <defaults>
</compile_context>

<pallas_src>
import jax
import jax.numpy as jnp
from jax.experimental import pallas as pl
from jax.experimental.pallas import tpu as pltpu


LATENT = 100      # latent_dimension of the module
OUT = 2           # n_out of the module
OUT_PAD = 128     # lane-dense padded output width
HIGH = jax.lax.Precision.HIGHEST


# --------------------------------------------------------------------------
# Kernel: one fused (TB,100) @ (100,128) + (1,128) per batch tile.
# --------------------------------------------------------------------------
def generator_kernel(x_ref, w_ref, b_ref, out_ref):
    # bf16 operands on the MXU, f32 accumulation, f32 bias add + store.
    acc = jnp.dot(x_ref[...], w_ref[...], preferred_element_type=jnp.float32)
    out_ref[...] = (acc + b_ref[...]).astype(out_ref.dtype)


# --------------------------------------------------------------------------
# Parameters (nn.Linear-style shapes, stored as (in, out)) and offline fold.
# --------------------------------------------------------------------------
def init_params(key):
    """Deterministic init matching nn.Linear default shapes/ranges, f32."""
    dims = [(LATENT, 256), (256, 512), (512, 1024), (1024, OUT)]
    params = []
    for i, (fan_in, fan_out) in enumerate(dims):
        kw, kb = jax.random.split(jax.random.fold_in(key, i))
        bound = 1.0 / (fan_in ** 0.5)
        w = jax.random.uniform(kw, (fan_in, fan_out), jnp.float32, -bound, bound)
        b = jax.random.uniform(kb, (1, fan_out), jnp.float32, -bound, bound)
        params.append((w, b))
    return params


def fold_params(params):
    """Fold the purely affine chain (f32) and pad the output dim 2 -> 128."""
    (w_eff, b_eff) = params[0]
    for w, b in params[1:]:
        w_eff = jnp.dot(w_eff, w, precision=HIGH)
        b_eff = jnp.dot(b_eff, w, precision=HIGH) + b
    w_pad = jnp.zeros((LATENT, OUT_PAD), jnp.float32).at[:, :OUT].set(w_eff)
    b_pad = jnp.zeros((1, OUT_PAD), jnp.float32).at[:, :OUT].set(b_eff)
    return w_pad.astype(jnp.bfloat16), b_pad  # bf16 weight, f32 bias


# --------------------------------------------------------------------------
# Tiling policy (static, shape-based).
# --------------------------------------------------------------------------
def _round_up(n, m):
    return ((n + m - 1) // m) * m


def _tile_plan(B):
    """Pick (TB, B_pad): adaptive batch tile, >=2 grid steps when possible."""
    b128 = _round_up(max(B, 1), 128)
    if b128 <= 128:
        return 128, 128                       # tiny batch: single 128-row step
    # >= 2 grid steps (feeds both v7x TensorCores); tile capped at 1024 rows.
    tb = min(1024, max(128, (b128 // 2) // 128 * 128))
    return tb, _round_up(b128, tb)


# --------------------------------------------------------------------------
# Wrapper.
# --------------------------------------------------------------------------
@jax.jit
def generator_forward(x, w_eff, b_eff):
    """x: (B, 100) f32.  w_eff: (100, 128) bf16.  b_eff: (1, 128) f32."""
    B = x.shape[0]
    TB, B_pad = _tile_plan(B)

    xb = x.astype(jnp.bfloat16)
    if B_pad != B:
        xb = jnp.pad(xb, ((0, B_pad - B), (0, 0)))   # zero rows, sliced off

    out = pl.pallas_call(
        generator_kernel,
        out_shape=jax.ShapeDtypeStruct((B_pad, OUT_PAD), jnp.float32),
        grid=(B_pad // TB,),
        in_specs=[
            pl.BlockSpec((TB, LATENT), lambda i: (i, 0)),       # x tile
            pl.BlockSpec((LATENT, OUT_PAD), lambda i: (0, 0)),  # resident W_eff
            pl.BlockSpec((1, OUT_PAD), lambda i: (0, 0)),       # resident b_eff
        ],
        out_specs=pl.BlockSpec((TB, OUT_PAD), lambda i: (i, 0)),
        compiler_params=pltpu.CompilerParams(
            dimension_semantics=("parallel",),   # shard batch over v7x's 2 TCs
            vmem_limit_bytes=32 << 20,           # footprint ~1.5 MiB at TB=1024
        ),
    )(xb, w_eff, b_eff)

    return out[:B, :OUT]


# --------------------------------------------------------------------------
# Pure-JAX f32 per-layer reference (module semantics).
# --------------------------------------------------------------------------
def reference_forward(x, params):
    h = x
    for w, b in params:
        h = jnp.dot(h, w, precision=HIGH) + b
    return h


if __name__ == "__main__":
    key = jax.random.PRNGKey(0)
    kx, kp = jax.random.split(key)

    params = init_params(kp)
    w_eff, b_eff = fold_params(params)

    # Small-batch case (B=8) and a non-multiple-of-tile case (B=300, 3 grid steps).
    for B in (8, 300):
        x = jax.random.normal(jax.random.fold_in(kx, B), (B, LATENT), jnp.float32)
        out = jax.block_until_ready(generator_forward(x, w_eff, b_eff))
        ref = reference_forward(x, params)
        assert out.shape == (B, OUT), out.shape
        assert jnp.allclose(out, ref, atol=2e-2, rtol=2e-2), (
            f"mismatch vs f32 per-layer reference at B={B}")

    print("KERNEL_OK")
</pallas_src>

<mosaic_0001>
module attributes {stable_mosaic.version = 11 : i64} {
  func.func @generator_kernel(%arg0: i32, %arg1: memref<128x100xbf16, #tpu.memory_space<vmem>>, %arg2: memref<100x128xbf16, #tpu.memory_space<vmem>>, %arg3: memref<1x128xf32, #tpu.memory_space<vmem>>, %arg4: memref<128x128xf32, #tpu.memory_space<vmem>>) attributes {dimension_semantics = [#tpu.dimension_semantics<parallel>], iteration_bounds = array<i64: 1>, scalar_prefetch = 0 : i64, scratch_operands = 0 : i64, tpu.core_type = #tpu.core_type<tc>, window_params = [{transform_indices = @transform_0, window_bounds = array<i64: 128, 100>}, {pipeline_mode = #tpu.pipeline_mode<synchronous>, transform_indices = @transform_1, window_bounds = array<i64: 100, 128>}, {pipeline_mode = #tpu.pipeline_mode<synchronous>, transform_indices = @transform_2, window_bounds = array<i64: 1, 128>}, {transform_indices = @transform_3, window_bounds = array<i64: 128, 128>}]} {
    %c0 = arith.constant 0 : index
    %c0_0 = arith.constant 0 : index
    %0 = vector.load %arg1[%c0, %c0_0] : memref<128x100xbf16, #tpu.memory_space<vmem>>, vector<128x100xbf16>
    %c0_1 = arith.constant 0 : index
    %c0_2 = arith.constant 0 : index
    %1 = vector.load %arg2[%c0_1, %c0_2] : memref<100x128xbf16, #tpu.memory_space<vmem>>, vector<100x128xbf16>
    %cst = arith.constant dense<0.000000e+00> : vector<128x128xf32>
    %2 = tpu.matmul %0, %1, %cst {dimension_numbers = #tpu.dot_dimension_numbers<[1], [0], [0], [1], [0, 0, 1, 1], [], []>} : vector<128x100xbf16>, vector<100x128xbf16>, vector<128x128xf32> -> vector<128x128xf32>
    %c0_3 = arith.constant 0 : index
    %c0_4 = arith.constant 0 : index
    %3 = vector.load %arg3[%c0_3, %c0_4] : memref<1x128xf32, #tpu.memory_space<vmem>>, vector<1x128xf32>
    %4 = vector.broadcast %3 : vector<1x128xf32> to vector<128x128xf32>
    %5 = arith.addf %2, %4 : vector<128x128xf32>
    %c0_5 = arith.constant 0 : index
    %c0_6 = arith.constant 0 : index
    %6 = vector.load %arg4[%c0_5, %c0_6] : memref<128x128xf32, #tpu.memory_space<vmem>>, vector<128x128xf32>
    tpu.vector_store %arg4[%c0_5, %c0_6], %5 {strides = array<i32>} : memref<128x128xf32, #tpu.memory_space<vmem>>, vector<128x128xf32>,
    return
  }
  func.func @transform_0(%arg0: i32) -> (i32, i32) {
    %c0_i32 = arith.constant 0 : i32
    %c0_i32_0 = arith.constant 0 : i32
    return %arg0, %c0_i32 : i32, i32
  }
  func.func @transform_1(%arg0: i32) -> (i32, i32) {
    %c0_i32 = arith.constant 0 : i32
    %c0_i32_0 = arith.constant 0 : i32
    %c0_i32_1 = arith.constant 0 : i32
    return %c0_i32, %c0_i32_0 : i32, i32
  }
  func.func @transform_2(%arg0: i32) -> (i32, i32) {
    %c0_i32 = arith.constant 0 : i32
    %c0_i32_0 = arith.constant 0 : i32
    %c0_i32_1 = arith.constant 0 : i32
    return %c0_i32, %c0_i32_0 : i32, i32
  }
  func.func @transform_3(%arg0: i32) -> (i32, i32) {
    %c0_i32 = arith.constant 0 : i32
    %c0_i32_0 = arith.constant 0 : i32
    return %arg0, %c0_i32 : i32, i32
  }
}

</mosaic_0001>

<llo_original>
// kernel: generator_forward.1
$region0: #{generator_forward.1}
  #allocation0 [shape = 'u32[]', space=smem, size = 0x4, offset = 0x4, fixed_abs, tag = 'smem constant byte address 0x4 - core index']
  #allocation1 [shape = 'u32[144,128]{1,0:T(1,128)}', space=vmem, size = 0x12000, scoped, tag = 'internal scratch']
  %s0 = inlined_call_operand.vmem [shape: bf16[128,100], index: 0, kind: input, shape index: {}]
  %s1 = inlined_call_operand.vmem [shape: bf16[100,128], index: 1, kind: input, shape index: {}]
  %s2 = inlined_call_operand.vmem [shape: f32[1,128], index: 2, kind: input, shape index: {}]
  %s3 = inlined_call_operand.vmem [shape: f32[128,128], index: 3, kind: output, shape index: {}]
  %s4 = sld [smem:[#allocation0]]
  $region22: #{generator_forward.1} parent=0
    _
  %s6 = ssub.s32 1, %s4
  %s7 = scalar_select 0, %s6, %s4
  // Predicated region
  $region2: #{generator_forward.1} parent=0 // pred_check
    _
  $region3: #{generator_forward.1} parent=0 // pred_check_branch
    %9 = sbr.rel (0) target = $region5
  $region4: #{generator_forward.1} parent=0 // pred_region
    _
  $region5: #{generator_forward.1} parent=0 // pred_fallthru
    _
  // Predicated region
  $region6: #{generator_forward.1} parent=0 // pred_check
    _
  $region7: #{generator_forward.1} parent=0 // pred_check_branch
    %11 = sbr.rel (0) target = $region9
  $region8: #{generator_forward.1} parent=0 // pred_region
    _
  $region9: #{generator_forward.1} parent=0 // pred_fallthru
    _
  // Predicated region
  $region10: #{generator_forward.1} parent=0 // pred_check
    _
  $region11: #{generator_forward.1} parent=0 // pred_check_branch
    %13 = sbr.rel (0) target = $region13
  $region12: #{generator_forward.1} parent=0 // pred_region
    _
  $region13: #{generator_forward.1} parent=0 // pred_fallthru
    _
  %v15 = vld [vmem:[%s0] sm:$0xf]
  %v16 = vld [vmem:[%s0 + $0x4] sm:$0xf]
  %v17 = vld [vmem:[%s0 + $0x8] sm:$0xf]
  %v18 = vld [vmem:[%s0 + $0xc] sm:$0xf]
  %v19 = vld [vmem:[%s0 + $0x10] sm:$0xf]
  %v20 = vld [vmem:[%s0 + $0x14] sm:$0xf]
  %v21 = vld [vmem:[%s0 + $0x18] sm:$0xf]
  %v22 = vld [vmem:[%s0 + $0x1c] sm:$0xf]
  %v23 = vld [vmem:[%s0 + $0x20] sm:$0xf]
  %v24 = vld [vmem:[%s0 + $0x24] sm:$0xf]
  %v25 = vld [vmem:[%s0 + $0x28] sm:$0xf]
  %v26 = vld [vmem:[%s0 + $0x2c] sm:$0xf]
  %v27 = vld [vmem:[%s0 + $0x30] sm:$0xf]
  %v28 = vld [vmem:[%s0 + $0x34] sm:$0xf]
  %v29 = vld [vmem:[%s0 + $0x38] sm:$0xf]
  %v30 = vld [vmem:[%s0 + $0x3c] sm:$0xf]
  %v31 = vld [vmem:[%s1] sm:$0xf]
  %v32 = vld [vmem:[%s1 + $0x4] sm:$0xf]
  %v33 = vld [vmem:[%s1 + $0x8] sm:$0xf]
  %v34 = vld [vmem:[%s1 + $0xc] sm:$0xf]
  %v35 = vld [vmem:[%s1 + $0x10] sm:$0xf]
  %v36 = vld [vmem:[%s1 + $0x14] sm:$0xf]
  %v37 = vld [vmem:[%s1 + $0x18] sm:$0xf]
  %v38 = vld [vmem:[%s1 + $0x1c] sm:$0xf]
  %v39 = vld [vmem:[%s1 + $0x20] sm:$0xf]
  %v40 = vld [vmem:[%s1 + $0x24] sm:$0xf]
  %v41 = vld [vmem:[%s1 + $0x28] sm:$0xf]
  %v42 = vld [vmem:[%s1 + $0x2c] sm:$0xf]
  %v43 = vld [vmem:[%s1 + $0x30] sm:$0x3]
  %v44 = vld [vmem:[%s2] sm:$0x1]
  %v46 = vlaneseq
  %v47 = vshrl.u32 %v46, 7
  %v48 = vsub.s32 0, %v47
  %v49 = vrot.slane %v44, %v48
  %v67 = vunpack.c.l.b16 %v15
  %v68 = vunpack.c.l.b16 %v16
  %v69 = vunpack.c.l.b16 %v17
  %v70 = vunpack.c.l.b16 %v18
  %v71 = vunpack.c.l.b16 %v19
  %v72 = vunpack.c.l.b16 %v20
  %v73 = vunpack.c.l.b16 %v21
  %v74 = vunpack.c.l.b16 %v22
  %v75 = vunpack.c.l.b16 %v23
  %v76 = vunpack.c.l.b16 %v24
  %v77 = vunpack.c.l.b16 %v25
  %v78 = vunpack.c.l.b16 %v26
  %v79 = vunpack.c.l.b16 %v27
  %v80 = vunpack.c.l.b16 %v28
  %v81 = vunpack.c.l.b16 %v29
  %v82 = vunpack.c.l.b16 %v30
  %v83 = vpack.c.b16 %v68, %v67
  %v84 = vpack.c.b16 %v70, %v69
  %v85 = vpack.c.b16 %v72, %v71
  %v86 = vpack.c.b16 %v74, %v73
  %v87 = vpack.c.b16 %v76, %v75
  %v88 = vpack.c.b16 %v78, %v77
  %v89 = vpack.c.b16 %v80, %v79
  %v90 = vpack.c.b16 %v82, %v81
  %v104 = vunpack.c.l.b16 %v31
  %v105 = vunpack.c.l.b16 %v32
  %v106 = vunpack.c.l.b16 %v33
  %v107 = vunpack.c.l.b16 %v34
  %v108 = vunpack.c.l.b16 %v35
  %v109 = vunpack.c.l.b16 %v36
  %v110 = vunpack.c.l.b16 %v37
  %v111 = vunpack.c.l.b16 %v38
  %v112 = vunpack.c.l.b16 %v39
  %v113 = vunpack.c.l.b16 %v40
  %v114 = vunpack.c.l.b16 %v41
  %v115 = vunpack.c.l.b16 %v42
  %v116 = vunpack.c.l.b16 %v43
  %v117 = vpack.c.b16 %v105, %v104
  %v118 = vpack.c.b16 %v107, %v106
  %v119 = vpack.c.b16 %v109, %v108
  %v120 = vpack.c.b16 %v111, %v110
  %v121 = vpack.c.b16 %v113, %v112
  %v122 = vpack.c.b16 %v115, %v114
  %v123 = vpack.c.b16 %v116, %v116
  %vm130 = vcmask 818176
  %v132 = vsel %vm130, %v83, 0
  %v135 = vsel %vm130, %v84, 0
  %v138 = vsel %vm130, %v85, 0
  %v141 = vsel %vm130, %v86, 0
  %v144 = vsel %vm130, %v87, 0
  %v147 = vsel %vm130, %v88, 0
  %v150 = vsel %vm130, %v89, 0
  %v153 = vsel %vm130, %v90, 0
  %vm155 = vcmask 1041408
  %v157 = vsel %vm155, %v123, 0
  %159 = vmatprep.subr.bf16.mxu0 0
  %160 = vmatpush1.bf16.msra.mxu0 %v117
  %161 = vmatprep.subr.bf16.mxu0 0
  %162 = vmatpush1.bf16.msra.mxu0 %v118
  %163 = vmatprep.subr.bf16.mxu0 0
  %164 = vmatpush1.bf16.msra.mxu0 %v119
  %165 = vmatprep.subr.bf16.mxu0 0
  %166 = vmatpush1.bf16.msra.mxu0 %v120
  %167 = vmatprep.subr.bf16.mxu0 0
  %168 = vmatpush1.bf16.msra.mxu0 %v121
  %169 = vmatprep.subr.bf16.mxu0 0
  %170 = vmatpush1.bf16.msra.mxu0 %v122
  %171 = vmatprep.subr.bf16.mxu0 0
  %172 = vmatpush1.bf16.msra.mxu0 %v157
  %173 = vmatprep.subr.bf16.mxu0 0
  %174 = vmatpush1.bf16.msra.mxu0 0
  %175 = vmatprep.subr.bf16.mxu0 0
  %176 = vmatpush1.bf16.msra.mxu0 0
  %177 = vmatprep.subr.bf16.mxu0 0
  %178 = vmatpush1.bf16.msra.mxu0 0
  %179 = vmatprep.subr.bf16.mxu0 0
  %180 = vmatpush1.bf16.msra.mxu0 0
  %181 = vmatprep.subr.bf16.mxu0 0
  %182 = vmatpush1.bf16.msra.mxu0 0
  %183 = vmatprep.subr.bf16.mxu0 0
  %184 = vmatpush1.bf16.msra.mxu0 0
  %185 = vmatprep.subr.bf16.mxu0 0
  %186 = vmatpush1.bf16.msra.mxu0 0
  %187 = vmatprep.subr.bf16.mxu0 0
  %188 = vmatpush1.bf16.msra.mxu0 0
  %189 = vmatprep.subr.bf16.mxu0 0
  %190 = vmatpush1.bf16.msra.mxu0 0
  %191 = vmatprep.mubr.bf16.mxu0 0
  %192 = vmatmul.mubr.bf16.gmra.mrb[0].mxu0 %v132
  %v193 = vpop.f32.mrb[0].mxu0
  %v194 = vadd.f32 %v49, %v193
  %v195 = vpop.f32.mrb[0].mxu0
  %v196 = vpop.f32.mrb[0].mxu0
  %v197 = vadd.f32 %v49, %v196
  %v198 = vpop.f32.mrb[0].mxu0
  %199 = vmatprep.mubr.bf16.mxu0 0
  %200 = vmatmul.mubr.bf16.gmra.mrb[0].mxu0 %v135
  %v201 = vpop.f32.mrb[0].mxu0
  %v202 = vadd.f32 %v49, %v201
  %v203 = vpop.f32.mrb[0].mxu0
  %v204 = vpop.f32.mrb[0].mxu0
  %v205 = vadd.f32 %v49, %v204
  %v206 = vpop.f32.mrb[0].mxu0
  %207 = vmatprep.mubr.bf16.mxu0 0
  %208 = vmatmul.mubr.bf16.gmra.mrb[0].mxu0 %v138
  %v209 = vpop.f32.mrb[0].mxu0
  %v210 = vadd.f32 %v49, %v209
  %v211 = vpop.f32.mrb[0].mxu0
  %v212 = vpop.f32.mrb[0].mxu0
  %v213 = vadd.f32 %v49, %v212
  %v214 = vpop.f32.mrb[0].mxu0
  %215 = vmatprep.mubr.bf16.mxu0 0
  %216 = vmatmul.mubr.bf16.gmra.mrb[0].mxu0 %v141
  %v217 = vpop.f32.mrb[0].mxu0
  %v218 = vadd.f32 %v49, %v217
  %v219 = vpop.f32.mrb[0].mxu0
  %v220 = vpop.f32.mrb[0].mxu0
  %v221 = vadd.f32 %v49, %v220
  %v222 = vpop.f32.mrb[0].mxu0
  %223 = vmatprep.mubr.bf16.mxu0 0
  %224 = vmatmul.mubr.bf16.gmra.mrb[0].mxu0 %v144
  %v225 = vpop.f32.mrb[0].mxu0
  %v226 = vadd.f32 %v49, %v225
  %v227 = vpop.f32.mrb[0].mxu0
  %v228 = vpop.f32.mrb[0].mxu0
  %v229 = vadd.f32 %v49, %v228
  %v230 = vpop.f32.mrb[0].mxu0
  %231 = vmatprep.mubr.bf16.mxu0 0
  %232 = vmatmul.mubr.bf16.gmra.mrb[0].mxu0 %v147
  %v233 = vpop.f32.mrb[0].mxu0
  %v234 = vadd.f32 %v49, %v233
  %v235 = vpop.f32.mrb[0].mxu0
  %v236 = vpop.f32.mrb[0].mxu0
  %v237 = vadd.f32 %v49, %v236
  %v238 = vpop.f32.mrb[0].mxu0
  %239 = vmatprep.mubr.bf16.mxu0 0
  %240 = vmatmul.mubr.bf16.gmra.mrb[0].mxu0 %v150
  %v241 = vpop.f32.mrb[0].mxu0
  %v242 = vadd.f32 %v49, %v241
  %v243 = vpop.f32.mrb[0].mxu0
  %v244 = vpop.f32.mrb[0].mxu0
  %v245 = vadd.f32 %v49, %v244
  %v246 = vpop.f32.mrb[0].mxu0
  %247 = vmatprep.mubr.bf16.mxu0 0
  %248 = vmatmul.mubr.bf16.gmra.mrb[0].mxu0 %v153
  %v249 = vpop.f32.mrb[0].mxu0
  %v250 = vadd.f32 %v49, %v249
  %v251 = vpop.f32.mrb[0].mxu0
  %v252 = vpop.f32.mrb[0].mxu0
  %v253 = vadd.f32 %v49, %v252
  %v254 = vpop.f32.mrb[0].mxu0
  %255 = vdwg.mxu0
  %256 = vst [vmem:[%s3] sm:$0xff] %v194
  %257 = vst [vmem:[%s3 + $0x8] sm:$0xff] %v197
  %258 = vst [vmem:[%s3 + $0x10] sm:$0xff] %v202
  %259 = vst [vmem:[%s3 + $0x18] sm:$0xff] %v205
  %260 = vst [vmem:[%s3 + $0x20] sm:$0xff] %v210
  %261 = vst [vmem:[%s3 + $0x28] sm:$0xff] %v213
  %262 = vst [vmem:[%s3 + $0x30] sm:$0xff] %v218
  %263 = vst [vmem:[%s3 + $0x38] sm:$0xff] %v221
  %264 = vst [vmem:[%s3 + $0x40] sm:$0xff] %v226
  %265 = vst [vmem:[%s3 + $0x48] sm:$0xff] %v229
  %266 = vst [vmem:[%s3 + $0x50] sm:$0xff] %v234
  %267 = vst [vmem:[%s3 + $0x58] sm:$0xff] %v237
  %268 = vst [vmem:[%s3 + $0x60] sm:$0xff] %v242
  %269 = vst [vmem:[%s3 + $0x68] sm:$0xff] %v245
  %270 = vst [vmem:[%s3 + $0x70] sm:$0xff] %v250
  %271 = vst [vmem:[%s3 + $0x78] sm:$0xff] %v253
  // Predicated region
  $region14: #{generator_forward.1} parent=0 // pred_check
    _
  $region15: #{generator_forward.1} parent=0 // pred_check_branch
    %273 = sbr.rel (0) target = $region17
  $region16: #{generator_forward.1} parent=0 // pred_region
    _
  $region17: #{generator_forward.1} parent=0 // pred_fallthru
    _
  // Predicated region
  $region18: #{generator_forward.1} parent=0 // pred_check
    _
  $region19: #{generator_forward.1} parent=0 // pred_check_branch
    %275 = sbr.rel (0) target = $region21
  $region20: #{generator_forward.1} parent=0 // pred_region
    _
  $region21: #{generator_forward.1} parent=0 // pred_fallthru
    _

</llo_original>
